<compile_context>
chip_gen: v7x
topology: tpu7x:2x2x1
jax: 0.10.0
libtpu: 0.0.40
codegen_flags: <defaults>
</compile_context>

<pallas_src>
import functools
import math

import jax
import jax.numpy as jnp
from jax.experimental import pallas as pl
from jax.experimental.pallas import tpu as pltpu


def _round_up(x, m):
    return -(-x // m) * m


def _choose_tiles(L, P, block_i, block_j):
    """Pick (TI, TJ, padded_L) so all block-layout constraints hold."""
    # TI is a second-to-last block dim -> multiple of 8 (sublane).
    TI = _round_up(min(block_i, _round_up(L, 8)), 8)
    # TJ only appears inside the lane product TJ*P, which must be a multiple of 128.
    j_unit = 128 // math.gcd(P, 128)
    j_unit = (j_unit * 8) // math.gcd(j_unit, 8)          # lcm(j_unit, 8)
    TJ = _round_up(min(block_j, _round_up(L, j_unit)), j_unit)
    # Pad L so both tile sizes divide it exactly (graceful ragged-L handling).
    Lp = _round_up(L, (TI * TJ) // math.gcd(TI, TJ))
    return TI, TJ, Lp


def _opm_kernel_pair(h_ref, u_ref, b2_ref, pair_ref, out_ref):
    # h_ref:    (1, TI, D)        u_ref:   (1, D, TJ*P)   (resident across inner i axis)
    # b2_ref:   (1, TJ*P)         pair_ref:(1, TI, TJ*P)  out_ref: (1, TI, TJ*P)
    out = jnp.dot(h_ref[0], u_ref[0], preferred_element_type=jnp.float32)
    out_ref[0] = out + b2_ref[...] + pair_ref[0]


def _opm_kernel_nopair(h_ref, u_ref, b2_ref, out_ref):
    out = jnp.dot(h_ref[0], u_ref[0], preferred_element_type=jnp.float32)
    out_ref[0] = out + b2_ref[...]


@functools.partial(jax.jit, static_argnames=("block_i", "block_j"))
def outer_product_mean(seq_rep, w1, b1, w2, b2, pair_rep=None, *,
                       block_i=128, block_j=128):
    """seq_rep: (B, L, in_dim); w1: (D, in_dim); b1: (D,);
       w2: (P, D*D) with flat input index c*D + d; b2: (P,);
       pair_rep: (B, L, L, P) or None.  Returns (B, L, L, P) float32."""
    B, L, _ = seq_rep.shape
    D = w1.shape[0]
    P = w2.shape[0]

    TI, TJ, Lp = _choose_tiles(L, P, block_i, block_j)

    # ---- tiny glue compute (fused by XLA under this jit) --------------------------
    h = jnp.dot(seq_rep, w1.T, preferred_element_type=jnp.float32) + b1      # (B, L, D)
    if Lp != L:
        h = jnp.pad(h, ((0, 0), (0, Lp - L), (0, 0)))                        # (B, Lp, D)
    # U[b, d, j, p] = sum_c h[b, j, c] * W2[p, c*D + d]   (tiny: B*D*Lp*P floats)
    w2r = w2.reshape(P, D, D)                                                # [p, c, d]
    u = jnp.einsum('bjc,pcd->bdjp', h, w2r,
                   preferred_element_type=jnp.float32)                       # (B, D, Lp, P)
    u_flat = u.reshape(B, D, Lp * P)                                         # lane index = j*P + p
    b2_rep = jnp.tile(b2.astype(jnp.float32), TJ).reshape(1, TJ * P)         # bias tiled over j

    has_pair = pair_rep is not None
    if has_pair:
        pair_flat = pair_rep.astype(jnp.float32)
        if Lp != L:
            pair_flat = jnp.pad(pair_flat,
                                ((0, 0), (0, Lp - L), (0, Lp - L), (0, 0)))
        pair_flat = pair_flat.reshape(B, Lp, Lp * P)

    # Grid: (batch, j-tile, i-tile).  i is innermost so the U j-tile stays resident.
    grid = (B, Lp // TJ, Lp // TI)

    in_specs = [
        pl.BlockSpec((1, TI, D), lambda b, j, i: (b, i, 0)),          # h, i-tile
        pl.BlockSpec((1, D, TJ * P), lambda b, j, i: (b, 0, j)),      # U, j-tile (resident)
        pl.BlockSpec((1, TJ * P), lambda b, j, i: (0, 0)),            # bias (resident)
    ]
    args = [h, u_flat, b2_rep]
    if has_pair:
        in_specs.append(pl.BlockSpec((1, TI, TJ * P), lambda b, j, i: (b, i, j)))
        args.append(pair_flat)
        kernel = _opm_kernel_pair
    else:
        kernel = _opm_kernel_nopair

    out_spec = pl.BlockSpec((1, TI, TJ * P), lambda b, j, i: (b, i, j))

    out_flat = pl.pallas_call(
        kernel,
        out_shape=jax.ShapeDtypeStruct((B, Lp, Lp * P), jnp.float32),
        grid_spec=pltpu.PrefetchScalarGridSpec(
            num_scalar_prefetch=0,
            grid=grid,
            in_specs=in_specs,
            out_specs=out_spec,
        ),
        compiler_params=pltpu.CompilerParams(
            dimension_semantics=("parallel", "parallel", "arbitrary"),
            # ~18 MiB actually used at 128 tiles / D=32 / P=64; 48 MiB is safe on
            # v5e/v6e (128 MiB) and v7x (64 MiB per TC).
            vmem_limit_bytes=48 * 1024 * 1024,
        ),
    )(*args)

    out = out_flat.reshape(B, Lp, Lp, P)
    if Lp != L:
        out = out[:, :L, :L, :]
    return out


def _reference(seq_rep, w1, b1, w2, b2):
    """Pure-JAX reimplementation of the PyTorch forward (without pair add)."""
    B, L, _ = seq_rep.shape
    D = w1.shape[0]
    h = seq_rep @ w1.T + b1                                          # (B, L, D)
    op = jnp.einsum('bid,bjc->bijcd', h, h).reshape(B, L, L, D * D)
    return op @ w2.T + b2                                            # (B, L, L, P)


if __name__ == "__main__":
    # Small shapes consistent with the module: in_dim=32, dim_msa=8, pairwise_dim=16.
    # block_i/block_j=8 so the 3-D grid, tiling and residency paths are exercised.
    B, L, in_dim, D, P = 2, 16, 32, 8, 16

    key = jax.random.PRNGKey(0)
    k_seq, k_pair, k_w1, k_b1, k_w2, k_b2 = jax.random.split(key, 6)

    seq_rep = jax.random.normal(k_seq, (B, L, in_dim), jnp.float32)
    pair_rep = jax.random.normal(k_pair, (B, L, L, P), jnp.float32)

    # PyTorch Linear shapes: weight=(out, in), bias=(out,).
    w1 = jax.random.uniform(k_w1, (D, in_dim), jnp.float32, -0.1, 0.1)
    b1 = jax.random.uniform(k_b1, (D,), jnp.float32, -0.1, 0.1)
    w2 = jax.random.uniform(k_w2, (P, D * D), jnp.float32, -0.1, 0.1)
    b2 = jax.random.uniform(k_b2, (P,), jnp.float32, -0.1, 0.1)

    # With pair_rep.
    out = outer_product_mean(seq_rep, w1, b1, w2, b2, pair_rep, block_i=8, block_j=8)
    out = jax.block_until_ready(out)
    ref = _reference(seq_rep, w1, b1, w2, b2) + pair_rep
    assert out.shape == (B, L, L, P)
    assert jnp.allclose(out, ref, atol=1e-4, rtol=1e-4), "mismatch vs reference (pair)"

    # Without pair_rep (no zeros tensor is synthesized or streamed).
    out_np = outer_product_mean(seq_rep, w1, b1, w2, b2, None, block_i=8, block_j=8)
    out_np = jax.block_until_ready(out_np)
    ref_np = _reference(seq_rep, w1, b1, w2, b2)
    assert jnp.allclose(out_np, ref_np, atol=1e-4, rtol=1e-4), "mismatch vs reference (no pair)"

    # Ragged L (not a multiple of the tile): exercises the pad-and-slice path.
    Lr = 12
    seq_r = jax.random.normal(k_seq, (B, Lr, in_dim), jnp.float32)
    pair_r = jax.random.normal(k_pair, (B, Lr, Lr, P), jnp.float32)
    out_r = outer_product_mean(seq_r, w1, b1, w2, b2, pair_r, block_i=8, block_j=8)
    out_r = jax.block_until_ready(out_r)
    ref_r = _reference(seq_r, w1, b1, w2, b2) + pair_r
    assert out_r.shape == (B, Lr, Lr, P)
    assert jnp.allclose(out_r, ref_r, atol=1e-4, rtol=1e-4), "mismatch vs reference (ragged)"

    print("KERNEL_OK")
</pallas_src>

<mosaic_0001>
module attributes {stable_mosaic.version = 11 : i64} {
  func.func @_opm_kernel_pair(%arg0: i32, %arg1: i32, %arg2: i32, %arg3: memref<1x8x8xf32, #tpu.memory_space<vmem>>, %arg4: memref<1x8x128xf32, #tpu.memory_space<vmem>>, %arg5: memref<1x128xf32, #tpu.memory_space<vmem>>, %arg6: memref<1x8x128xf32, #tpu.memory_space<vmem>>, %arg7: memref<1x8x128xf32, #tpu.memory_space<vmem>>) attributes {dimension_semantics = [#tpu.dimension_semantics<parallel>, #tpu.dimension_semantics<parallel>, #tpu.dimension_semantics<arbitrary>], iteration_bounds = array<i64: 2, 2, 2>, scalar_prefetch = 0 : i64, scratch_operands = 0 : i64, tpu.core_type = #tpu.core_type<tc>, window_params = [{transform_indices = @transform_0, window_bounds = array<i64: 1, 8, 8>}, {transform_indices = @transform_1, window_bounds = array<i64: 1, 8, 128>}, {pipeline_mode = #tpu.pipeline_mode<synchronous>, transform_indices = @transform_2, window_bounds = array<i64: 1, 128>}, {transform_indices = @transform_3, window_bounds = array<i64: 1, 8, 128>}, {transform_indices = @transform_4, window_bounds = array<i64: 1, 8, 128>}]} {
    %c0 = arith.constant 0 : index
    %c0_0 = arith.constant 0 : index
    %c0_1 = arith.constant 0 : index
    %0 = vector.load %arg3[%c0, %c0_0, %c0_1] : memref<1x8x8xf32, #tpu.memory_space<vmem>>, vector<1x8x8xf32>
    %1 = vector.shape_cast %0 : vector<1x8x8xf32> to vector<8x8xf32>
    %c0_2 = arith.constant 0 : index
    %c0_3 = arith.constant 0 : index
    %c0_4 = arith.constant 0 : index
    %2 = vector.load %arg4[%c0_2, %c0_3, %c0_4] : memref<1x8x128xf32, #tpu.memory_space<vmem>>, vector<1x8x128xf32>
    %3 = vector.shape_cast %2 : vector<1x8x128xf32> to vector<8x128xf32>
    %cst = arith.constant dense<0.000000e+00> : vector<8x128xf32>
    %4 = tpu.matmul %1, %3, %cst {dimension_numbers = #tpu.dot_dimension_numbers<[1], [0], [0], [1], [0, 0, 1, 1], [], []>} : vector<8x8xf32>, vector<8x128xf32>, vector<8x128xf32> -> vector<8x128xf32>
    %c0_5 = arith.constant 0 : index
    %c0_6 = arith.constant 0 : index
    %5 = vector.load %arg5[%c0_5, %c0_6] : memref<1x128xf32, #tpu.memory_space<vmem>>, vector<1x128xf32>
    %6 = vector.broadcast %5 : vector<1x128xf32> to vector<8x128xf32>
    %7 = arith.addf %4, %6 : vector<8x128xf32>
    %c0_7 = arith.constant 0 : index
    %c0_8 = arith.constant 0 : index
    %c0_9 = arith.constant 0 : index
    %8 = vector.load %arg6[%c0_7, %c0_8, %c0_9] : memref<1x8x128xf32, #tpu.memory_space<vmem>>, vector<1x8x128xf32>
    %9 = vector.shape_cast %8 : vector<1x8x128xf32> to vector<8x128xf32>
    %10 = arith.addf %7, %9 : vector<8x128xf32>
    %c0_10 = arith.constant 0 : index
    %c0_11 = arith.constant 0 : index
    %c0_12 = arith.constant 0 : index
    %11 = vector.load %arg7[%c0_10, %c0_11, %c0_12] : memref<1x8x128xf32, #tpu.memory_space<vmem>>, vector<1x8x128xf32>
    %12 = vector.shape_cast %11 : vector<1x8x128xf32> to vector<8x128xf32>
    %13 = vector.shape_cast %10 : vector<8x128xf32> to vector<1x8x128xf32>
    tpu.vector_store %arg7[%c0_10, %c0_11, %c0_12], %13 {strides = array<i32>} : memref<1x8x128xf32, #tpu.memory_space<vmem>>, vector<1x8x128xf32>,
    return
  }
  func.func @transform_0(%arg0: i32, %arg1: i32, %arg2: i32) -> (i32, i32, i32) {
    %c0_i32 = arith.constant 0 : i32
    %c0_i32_0 = arith.constant 0 : i32
    return %arg0, %arg2, %c0_i32 : i32, i32, i32
  }
  func.func @transform_1(%arg0: i32, %arg1: i32, %arg2: i32) -> (i32, i32, i32) {
    %c0_i32 = arith.constant 0 : i32
    %c0_i32_0 = arith.constant 0 : i32
    return %arg0, %c0_i32, %arg1 : i32, i32, i32
  }
  func.func @transform_2(%arg0: i32, %arg1: i32, %arg2: i32) -> (i32, i32) {
    %c0_i32 = arith.constant 0 : i32
    %c0_i32_0 = arith.constant 0 : i32
    %c0_i32_1 = arith.constant 0 : i32
    return %c0_i32, %c0_i32_0 : i32, i32
  }
  func.func @transform_3(%arg0: i32, %arg1: i32, %arg2: i32) -> (i32, i32, i32) {
    %c0_i32 = arith.constant 0 : i32
    return %arg0, %arg2, %arg1 : i32, i32, i32
  }
  func.func @transform_4(%arg0: i32, %arg1: i32, %arg2: i32) -> (i32, i32, i32) {
    %c0_i32 = arith.constant 0 : i32
    return %arg0, %arg2, %arg1 : i32, i32, i32
  }
}

</mosaic_0001>

<llo_original>
// kernel: tile.8
$region0: #{tile.8}
  #allocation0 [shape = 's32[1]{0}', space=sflag, size = 0x4, scoped, tag = 'scoped memory for tile.8']
  %s0 = inlined_call_operand.vmem [shape: f32[16], index: 0, kind: input, shape index: {}]
  %s1 = inlined_call_operand.vmem [shape: f32[8,16], index: 1, kind: output, shape index: {}]
  // Predicated region
  $region2: #{tile.8} parent=0 // pred_check
    _
  $region3: #{tile.8} parent=0 // pred_check_branch
    %3 = sbr.rel (0) target = $region5
  $region4: #{tile.8} parent=0 // pred_region
    _
  $region5: #{tile.8} parent=0 // pred_fallthru
    _
  %v4 = vld [vmem:[%s0] ss:$0 sm:$0xff]
  %5 = vst [vmem:[%s1] sm:$0xff] %v4

// kernel: tile.9
$region0: #{tile.9}
  %s0 = inlined_call_operand.vmem [shape: f32[8,16], index: 0, kind: input, shape index: {}]
  %s1 = inlined_call_operand.vmem [shape: f32[1,128], index: 1, kind: output, shape index: {}]
  $region1: #{tile.9} parent=0
    #allocation0 [shape = 'u8[4096]{0}', space=vmem, size = 0x1000, scoped, tag = 'scoped mem for output reshape']
    %v2 = vld [vmem:[%s0] sm:$0x1]
    %vm3 = vcmask 130048
    %4 = vst.msk [vmem:[#allocation0] sm:$0x1] %vm3, %v2
    %s5 = scalar_lea.vmem %s0, 7
    %v6 = vld [vmem:[%s5] sm:$0x1]
    %7 = vrot.lane.b32.xlu0 %v6, 112
    %v8 = vpop.permute.xlu0 %7
    %vm9 = vcmask 1048448
    %10 = vst.msk [vmem:[#allocation0] sm:$0x1] %vm9, %v8
    %s11 = scalar_lea.vmem %s0, 6
    %v12 = vld [vmem:[%s11] sm:$0x1]
    %13 = vrot.lane.b32.xlu0 %v12, 96
    %v14 = vpop.permute.xlu0 %13
    %vm15 = vcmask 917248
    %16 = vst.msk [vmem:[#allocation0] sm:$0x1] %vm15, %v14
    %s17 = scalar_lea.vmem %s0, 5
    %v18 = vld [vmem:[%s17] sm:$0x1]
    %19 = vrot.lane.b32.xlu0 %v18, 80
    %v20 = vpop.permute.xlu0 %19
    %vm21 = vcmask 786048
    %22 = vst.msk [vmem:[#allocation0] sm:$0x1] %vm21, %v20
    %s23 = scalar_lea.vmem %s0, 4
    %v24 = vld [vmem:[%s23] sm:$0x1]
    %25 = vrot.lane.b32.xlu0 %v24, 64
    %v26 = vpop.permute.xlu0 %25
    %vm27 = vcmask 654848
    %28 = vst.msk [vmem:[#allocation0] sm:$0x1] %vm27, %v26
    %s29 = scalar_lea.vmem %s0, 3
    %v30 = vld [vmem:[%s29] sm:$0x1]
    %31 = vrot.lane.b32.xlu0 %v30, 48
    %v32 = vpop.permute.xlu0 %31
    %vm33 = vcmask 523648
    %34 = vst.msk [vmem:[#allocation0] sm:$0x1] %vm33, %v32
    %s35 = scalar_lea.vmem %s0, 2
    %v36 = vld [vmem:[%s35] sm:$0x1]
    %37 = vrot.lane.b32.xlu0 %v36, 32
    %v38 = vpop.permute.xlu0 %37
    %vm39 = vcmask 392448
    %40 = vst.msk [vmem:[#allocation0] sm:$0x1] %vm39, %v38
    %s41 = scalar_lea.vmem %s0, 1
    %v42 = vld [vmem:[%s41] sm:$0x1]
    %43 = vrot.lane.b32.xlu0 %v42, 16
    %v44 = vpop.permute.xlu0 %43
    %vm45 = vcmask 261248
    %46 = vst.msk [vmem:[#allocation0] sm:$0x1] %vm45, %v44
    %s48 = sshllo.u32 0, 1
    %v50 = vld [vmem:[#allocation0] sm:%s48]
    %s51 = sshllo.u32 0, 1
    %52 = vst [vmem:[%s1] sm:%s51] %v50

// kernel: outer_product_mean.1
$region0: #{outer_product_mean.1}
  #allocation0 [shape = 'u32[]', space=smem, size = 0x4, offset = 0x4, fixed_abs, tag = 'smem constant byte address 0x4 - core index']
  #allocation1 [shape = 'u32[144,128]{1,0:T(1,128)}', space=vmem, size = 0x12000, scoped, tag = 'internal scratch']
  %s0 = inlined_call_operand.vmem [shape: f32[2,16,8], index: 0, kind: input, shape index: {}]
  %s1 = inlined_call_operand.vmem [shape: f32[2,8,256], index: 1, kind: input, shape index: {}]
  %s2 = inlined_call_operand.vmem [shape: f32[1,128], index: 2, kind: input, shape index: {}]
  %s3 = inlined_call_operand.vmem [shape: f32[2,16,256], index: 3, kind: input, shape index: {}]
  %s4 = inlined_call_operand.vmem [shape: f32[2,16,256], index: 4, kind: output, shape index: {}]
  %s5 = sld [smem:[#allocation0]]
  $region49: #{outer_product_mean.1} parent=0
    _
  %s7 = ssub.s32 1, %s5
  %s8 = scalar_select 0, %s7, %s5
  loop: start=0, step=1, limit=10
  $region2: #{outer_product_mean.1} parent=0 // loop_pre_header
    _
  $region3: #{outer_product_mean.1} parent=0 // loop_header
    %s10 = sphi 0, %s14
    %p11 = scmp.ge.s32.totalorder %s10, 10
    %s17 = sphi 0, %s36
    %s18 = sphi 0, %s32
    %s19 = sphi 0, %s28
    %s20 = sphi 0, %s17
    %s21 = sphi 0, %s18
    %s22 = sphi 0, %s19
    %s23 = sphi 0, %s20
    %s24 = sphi 0, %s21
    %s25 = sphi 0, %s22
    %s41 = sphi 0, %s43
    %s44 = sphi 0, %s41
    %s45 = sphi 0, %s44
    %s61 = sphi 0, %s45
    %s69 = sphi 0, %s71
    %s72 = sphi 0, %s69
    %s73 = sphi 0, %s72
    %s89 = sphi 0, %s73
    %s93 = sphi 0, %s93
    %s95 = sphi 0, %s93
    %s96 = sphi 0, %s95
    %s110 = sphi 0, %s96
    %s120 = sphi 0, %s122
    %s123 = sphi 0, %s120
    %s124 = sphi 0, %s123
    %s140 = sphi 0, %s124
    %s150 = sphi 0, %s152
    %s153 = sphi 0, %s150
    %s154 = sphi 0, %s153
    %s170 = sphi 0, %s154
  $region4: #{outer_product_mean.1} parent=0 // loop_header_branch
    %13 = sbr.rel (%p11) target = $region8
  $region5: #{outer_product_mean.1} parent=0 // loop_body
    %s15 = ssub.s32 %s10, 1
    %s16 = ssub.s32 %s10, 2
    %s26 = sadd.s32 1, %s19
    %p27 = scmp.ge.s32.totalorder %s26, 2
    %s28 = scalar_select %p27, 0, %s26
    %s29 = sadd.s32 1, %s18
    %s30 = scalar_select %p27, %s29, %s18
    %p31 = scmp.ge.s32.totalorder %s30, 2
    %s32 = scalar_select %p31, 0, %s30
    %s33 = sadd.s32 1, %s17
    %s34 = scalar_select %p31, %s33, %s17
    %p35 = scmp.ge.s32.totalorder %s34, 2
    %s36 = scalar_select %p35, 0, %s34
    %s37 = ssub.s32 %s17, %s36
    %s38 = ssub.s32 %s19, %s28
    %s39 = sor.u32 %s37, %s38
    %p40 = scmp.eq.s32.totalorder %s39, 0
    %s42 = sadd.s32 %s41, 1
    %s43 = scalar_select %p40, %s41, %s42
    %p46 = pneg %p40
    %p47 = scmp.eq.s32.totalorder %s10, 7
    %p48 = por %p46, %p47
    %p49 = scmp.ne.s32.totalorder %s41, %s44
    %p50 = scmp.eq.s32.totalorder %s10, 0
    %p51 = por %p49, %p50
    %p52 = scmp.ne.s32.totalorder %s41, %s44
    %p53 = scmp.eq.s32.totalorder %s15, 7
    %p54 = por %p52, %p53
    %p55 = scmp.ne.s32.totalorder %s44, %s45
    %p56 = scmp.eq.s32.totalorder %s15, 0
    %p57 = por %p55, %p56
    %p58 = scmp.ne.s32.totalorder %s44, %s45
    %p59 = scmp.eq.s32.totalorder %s16, 7
    %p60 = por %p58, %p59
    %p62 = scmp.ne.s32.totalorder %s45, %s61
    %p63 = scmp.eq.s32.totalorder %s16, 0
    %p64 = por %p62, %p63
    %s65 = ssub.s32 %s17, %s36
    %s66 = ssub.s32 %s18, %s32
    %s67 = sor.u32 %s65, %s66
    %p68 = scmp.eq.s32.totalorder %s67, 0
    %s70 = sadd.s32 %s69, 1
    %s71 = scalar_select %p68, %s69, %s70
    %p74 = pneg %p68
    %p75 = scmp.eq.s32.totalorder %s10, 7
    %p76 = por %p74, %p75
    %p77 = scmp.ne.s32.totalorder %s69, %s72
    %p78 = scmp.eq.s32.totalorder %s10, 0
    %p79 = por %p77, %p78
    %p80 = scmp.ne.s32.totalorder %s69, %s72
    %p81 = scmp.eq.s32.totalorder %s15, 7
    %p82 = por %p80, %p81
    %p83 = scmp.ne.s32.totalorder %s72, %s73
    %p84 = scmp.eq.s32.totalorder %s15, 0
    %p85 = por %p83, %p84
    %p86 = scmp.ne.s32.totalorder %s72, %s73
    %p87 = scmp.eq.s32.totalorder %s16, 7
    %p88 = por %p86, %p87
    %p90 = scmp.ne.s32.totalorder %s73, %s89
    %p91 = scmp.eq.s32.totalorder %s16, 0
    %p92 = por %p90, %p91
    %s94 = sadd.s32 %s93, 1
    %p97 = scmp.eq.s32.totalorder %s10, 7
    %p98 = scmp.ne.s32.totalorder %s93, %s95
    %p99 = scmp.eq.s32.totalorder %s10, 0
    %p100 = por %p98, %p99
    %p101 = scmp.ne.s32.totalorder %s93, %s95
    %p102 = scmp.eq.s32.totalorder %s15, 7
    %p103 = por %p101, %p102
    %p104 = scmp.ne.s32.totalorder %s95, %s96
    %p105 = scmp.eq.s32.totalorder %s15, 0
    %p106 = por %p104, %p105
    %p107 = scmp.ne.s32.totalorder %s95, %s96
    %p108 = scmp.eq.s32.totalorder %s16, 7
    %p109 = por %p107, %p108
    %p111 = scmp.ne.s32.totalorder %s96, %s110
    %p112 = scmp.eq.s32.totalorder %s16, 0
    %p113 = por %p111, %p112
    %s114 = ssub.s32 %s17, %s36
    %s115 = ssub.s32 %s19, %s28
    %s116 = sor.u32 %s114, %s115
    %s117 = ssub.s32 %s18, %s32
    %s118 = sor.u32 %s116, %s117
    %p119 = scmp.eq.s32.totalorder %s118, 0
    %s121 = sadd.s32 %s120, 1
    %s122 = scalar_select %p119, %s120, %s121
    %p125 = pneg %p119
    %p126 = scmp.eq.s32.totalorder %s10, 7
    %p127 = por %p125, %p126
    %p128 = scmp.ne.s32.totalorder %s120, %s123
    %p129 = scmp.eq.s32.totalorder %s10, 0
    %p130 = por %p128, %p129
    %p131 = scmp.ne.s32.totalorder %s120, %s123
    %p132 = scmp.eq.s32.totalorder %s15, 7
    %p133 = por %p131, %p132
    %p134 = scmp.ne.s32.totalorder %s123, %s124
    %p135 = scmp.eq.s32.totalorder %s15, 0
    %p136 = por %p134, %p135
    %p137 = scmp.ne.s32.totalorder %s123, %s124
    %p138 = scmp.eq.s32.totalorder %s16, 7
    %p139 = por %p137, %p138
    %p141 = scmp.ne.s32.totalorder %s124, %s140
    %p142 = scmp.eq.s32.totalorder %s16, 0
    %p143 = por %p141, %p142
    %s144 = ssub.s32 %s17, %s36
    %s145 = ssub.s32 %s19, %s28
    %s146 = sor.u32 %s144, %s145
    %s147 = ssub.s32 %s18, %s32
    %s148 = sor.u32 %s146, %s147
    %p149 = scmp.eq.s32.totalorder %s148, 0
    %s151 = sadd.s32 %s150, 1
    %s152 = scalar_select %p149, %s150, %s151
    %p155 = pneg %p149
    %p156 = scmp.eq.s32.totalorder %s10, 7
    %p157 = por %p155, %p156
    %p158 = scmp.ne.s32.totalorder %s150, %s153
    %p159 = scmp.eq.s32.totalorder %s10, 0
    %p160 = por %p158, %p159
    %p161 = scmp.ne.s32.totalorder %s150, %s153
    %p162 = scmp.eq.s32.totalorder %s15, 7
    %p163 = por %p161, %p162
    %p164 = scmp.ne.s32.totalorder %s153, %s154
    %p165 = scmp.eq.s32.totalorder %s15, 0
    %p166 = por %p164, %p165
    %p167 = scmp.ne.s32.totalorder %s153, %s154
    %p168 = scmp.eq.s32.totalorder %s16, 7
    %p169 = por %p167, %p168
    %p171 = scmp.ne.s32.totalorder %s154, %s170
    %p172 = scmp.eq.s32.totalorder %s16, 0
    %p173 = por %p171, %p172
    %p174 = scmp.le.s32.totalorder 1, %s10
    %p175 = scmp.lt.s32.totalorder %s10, 9
    %p176 = pnand %p174, %p175
    %p177 = pneg %p176
    // Predicated region
    $region9: #{outer_product_mean.1} parent=5 // pred_check
      _
    $region10: #{outer_product_mean.1} parent=5 // pred_check_branch
      %179 = sbr.rel (%p176) target = $region12
    $region11: #{outer_product_mean.1} parent=5 // pred_region
      %s180 = ssub.s32 %s10, 1
      // Predicated region
      $region13: #{outer_product_mean.1} parent=11 // pred_check
        %p181 = pneg %p106
      $region14: #{outer_product_mean.1} parent=11 // pred_check_branch
        %183 = sbr.rel (%p181) target = $region16
      $region15: #{outer_product_mean.1} parent=11 // pred_region
        _
      $region16: #{outer_product_mean.1} parent=11 // pred_fallthru
        _
    $region12: #{outer_product_mean.1} parent=5 // pred_fallthru
      _
    %p184 = scmp.lt.s32.totalorder %s10, 8
    // Predicated region
    $region17: #{outer_product_mean.1} parent=5 // pred_check
      %p185 = pneg %p184
    $region18: #{outer_product_mean.1} parent=5 // pred_check_branch
      %187 = sbr.rel (%p185) target = $region20
    $region19: #{outer_product_mean.1} parent=5 // pred_region
      // Predicated region
      $region21: #{outer_product_mean.1} parent=19 // pred_check
        %p188 = pneg %p51
      $region22: #{outer_product_mean.1} parent=19 // pred_check_branch
        %190 = sbr.rel (%p188) target = $region24
      $region23: #{outer_product_mean.1} parent=19 // pred_region
        %p191 = scmp.lt.s32.totalorder %s17, 1
        %s192 = scalar_select %p191, %s17, 1
        %p193 = scmp.lt.s32.totalorder %s19, 1
        %s194 = scalar_select %p193, %s19, 1
        %s195 = smul.addr %s192, 2
        %s196 = sadd.s32 %s194, %s195
        %s197 = smul.addr %s196, 8
        %s198 = scalar_lea.vmem %s0, %s197
      $region24: #{outer_product_mean.1} parent=19 // pred_fallthru
        _
      // Predicated region
      $region25: #{outer_product_mean.1} parent=19 // pred_check
        %p199 = pneg %p79
      $region26: #{outer_product_mean.1} parent=19 // pred_check_branch
        %201 = sbr.rel (%p199) target = $region28
      $region27: #{outer_product_mean.1} parent=19 // pred_region
        %p202 = scmp.lt.s32.totalorder %s17, 1
        %s203 = scalar_select %p202, %s17, 1
        %p204 = scmp.lt.s32.totalorder %s18, 1
        %s205 = scalar_select %p204, %s18, 1
        %s206 = smul.addr %s203, 2
        %s207 = sadd.s32 %s205, %s206
        %s208 = smul.addr %s207, 8
        %s209 = scalar_lea.vmem %s1, %s208
      $region28: #{outer_product_mean.1} parent=19 // pred_fallthru
        _
      // Predicated region
      $region29: #{outer_product_mean.1} parent=19 // pred_check
        %p210 = pneg %p130
      $region30: #{outer_product_mean.1} parent=19 // pred_check_branch
        %212 = sbr.rel (%p210) target = $region32
      $region31: #{outer_product_mean.1} parent=19 // pred_region
        %p213 = scmp.lt.s32.totalorder %s17, 1
        %s214 = scalar_select %p213, %s17, 1
        %p215 = scmp.lt.s32.totalorder %s19, 1
        %s216 = scalar_select %p215, %s19, 1
        %p217 = scmp.lt.s32.totalorder %s18, 1
        %s218 = scalar_select %p217, %s18, 1
        %s219 = smul.addr %s216, 2
        %s220 = sadd.s32 %s218, %s219
        %s221 = smul.addr %s214, 4
        %s222 = sadd.s32 %s220, %s221
        %s223 = smul.addr %s222, 8
        %s224 = scalar_lea.vmem %s3, %s223
      $region32: #{outer_product_mean.1} parent=19 // pred_fallthru
        _
    $region20: #{outer_product_mean.1} parent=5 // pred_fallthru
      _
    %p225 = scmp.le.s32.totalorder 1, %s10
    %p226 = scmp.lt.s32.totalorder %s10, 9
    %p227 = pnand %p225, %p226
    %p228 = pneg %p227
    // Predicated region
    $region33: #{outer_product_mean.1} parent=5 // pred_check
      _
    $region34: #{outer_product_mean.1} parent=5 // pred_check_branch
      %230 = sbr.rel (%p227) target = $region36
    $region35: #{outer_product_mean.1} parent=5 // pred_region
      %s231 = ssub.s32 %s10, 1
      %p232 = scmp.lt.s32.totalorder %s20, 1
      %s233 = scalar_select %p232, %s20, 1
      %p234 = scmp.lt.s32.totalorder %s22, 1
      %s235 = scalar_select %p234, %s22, 1
      %s236 = smul.addr %s233, 2
      %s237 = sadd.s32 %s235, %s236
      %s238 = smul.addr %s237, 8
      %s239 = scalar_lea.vmem %s0, %s238
      %p240 = pneg %p57
      %p241 = pneg %p54
      %p242 = scmp.lt.s32.totalorder %s20, 1
      %s243 = scalar_select %p242, %s20, 1
      %p244 = scmp.lt.s32.totalorder %s21, 1
      %s245 = scalar_select %p244, %s21, 1
      %s246 = smul.addr %s243, 2
      %s247 = sadd.s32 %s245, %s246
      %s248 = smul.addr %s247, 8
      %s249 = scalar_lea.vmem %s1, %s248
      %p250 = pneg %p85
      %p251 = pneg %p82
      %p252 = pneg %p106
      %p253 = pneg %p103
      %p254 = scmp.lt.s32.totalorder %s20, 1
      %s255 = scalar_select %p254, %s20, 1
      %p256 = scmp.lt.s32.totalorder %s22, 1
      %s257 = scalar_select %p256, %s22, 1
      %p258 = scmp.lt.s32.totalorder %s21, 1
      %s259 = scalar_select %p258, %s21, 1
      %s260 = smul.addr %s257, 2
      %s261 = sadd.s32 %s259, %s260
      %s262 = smul.addr %s255, 4
      %s263 = sadd.s32 %s261, %s262
      %s264 = smul.addr %s263, 8
      %s265 = scalar_lea.vmem %s3, %s264
      %p266 = pneg %p136
      %p267 = pneg %p133
      %p268 = pneg %p166
      %p269 = pneg %p163
      %p270 = scmp.lt.s32.totalorder %s20, 1
      %s271 = scalar_select %p270, %s20, 1
      %p272 = scmp.lt.s32.totalorder %s22, 1
      %s273 = scalar_select %p272, %s22, 1
      %p274 = scmp.lt.s32.totalorder %s21, 1
      %s275 = scalar_select %p274, %s21, 1
      %s276 = smul.addr %s273, 2
      %s277 = sadd.s32 %s275, %s276
      %s278 = smul.addr %s271, 4
      %s279 = sadd.s32 %s277, %s278
      %s280 = smul.addr %s279, 8
      %s281 = scalar_lea.vmem %s4, %s280
      %p282 = scmp.lt.s32.totalorder %s20, 1
      %s283 = scalar_select %p282, %s20, 1
      %p284 = scmp.lt.s32.totalorder %s22, 1
      %s285 = scalar_select %p284, %s22, 1
      %s286 = smul.addr %s283, 2
      %s287 = sadd.s32 %s285, %s286
      %s288 = smul.addr %s287, 8
      %s289 = scalar_lea.vmem %s0, %s288
      %p290 = scmp.lt.s32.totalorder %s20, 1
      %s291 = scalar_select %p290, %s20, 1
      %p292 = scmp.lt.s32.totalorder %s21, 1
      %s293 = scalar_select %p292, %s21, 1
      %s294 = smul.addr %s291, 2
      %s295 = sadd.s32 %s293, %s294
      %s296 = smul.addr %s295, 8
      %s297 = scalar_lea.vmem %s1, %s296
      %p298 = scmp.lt.s32.totalorder %s20, 1
      %s299 = scalar_select %p298, %s20, 1
      %p300 = scmp.lt.s32.totalorder %s22, 1
      %s301 = scalar_select %p300, %s22, 1
      %p302 = scmp.lt.s32.totalorder %s21, 1
      %s303 = scalar_select %p302, %s21, 1
      %s304 = smul.addr %s301, 2
      %s305 = sadd.s32 %s303, %s304
      %s306 = smul.addr %s299, 4
      %s307 = sadd.s32 %s305, %s306
      %s308 = smul.addr %s307, 8
      %s309 = scalar_lea.vmem %s3, %s308
      %p310 = scmp.lt.s32.totalorder %s20, 1
      %s311 = scalar_select %p310, %s20, 1
      %p312 = scmp.lt.s32.totalorder %s22, 1
      %s313 = scalar_select %p312, %s22, 1
      %p314 = scmp.lt.s32.totalorder %s21, 1
      %s315 = scalar_select %p314, %s21, 1
      %s316 = smul.addr %s313, 2
      %s317 = sadd.s32 %s315, %s316
      %s318 = smul.addr %s311, 4
      %s319 = sadd.s32 %s317, %s318
      %s320 = smul.addr %s319, 8
      %s321 = scalar_lea.vmem %s4, %s320
      %v322 = vld [vmem:[%s289] sm:$0xff]
      %v323 = vld [vmem:[%s297] sm:$0xff]
      %v324 = vld [vmem:[%s2] sm:$0x1]
      %v326 = vlaneseq
      %v327 = vshrl.u32 %v326, 7
      %v328 = vsub.s32 0, %v327
      %v329 = vrot.slane %v324, %v328
      %vm331 = vcmask 64512
      %v333 = vsel %vm331, %v322, 0
      %335 = vmatprep.subr.mxu0 0.0
      %336 = vmatpush1.msra.mxu0 %v323
      %337 = vmatprep.subr.mxu0 0.0
      %338 = vmatpush1.msra.mxu0 0.0
      %339 = vmatprep.subr.mxu0 0.0
      %340 = vmatpush1.msra.mxu0 0.0
      %341 = vmatprep.subr.mxu0 0.0
      %342 = vmatpush1.msra.mxu0 0.0
      %343 = vmatprep.subr.mxu0 0.0
      %344 = vmatpush1.msra.mxu0 0.0
      %345 = vmatprep.subr.mxu0 0.0
      %346 = vmatpush1.msra.mxu0 0.0
      %347 = vmatprep.subr.mxu0 0.0
      %348 = vmatpush1.msra.mxu0 0.0
      %349 = vmatprep.subr.mxu0 0.0
      %350 = vmatpush1.msra.mxu0 0.0
      %351 = vmatprep.subr.mxu0 0.0
      %352 = vmatpush1.msra.mxu0 0.0
      %353 = vmatprep.subr.mxu0 0.0
      %354 = vmatpush1.msra.mxu0 0.0
      %355 = vmatprep.subr.mxu0 0.0
      %356 = vmatpush1.msra.mxu0 0.0
      %357 = vmatprep.subr.mxu0 0.0
      %358 = vmatpush1.msra.mxu0 0.0
      %359 = vmatprep.subr.mxu0 0.0
      %360 = vmatpush1.msra.mxu0 0.0
      %361 = vmatprep.subr.mxu0 0.0
      %362 = vmatpush1.msra.mxu0 0.0
      %363 = vmatprep.subr.mxu0 0.0
      %364 = vmatpush1.msra.mxu0 0.0
      %365 = vmatprep.subr.mxu0 0.0
      %366 = vmatpush1.msra.mxu0 0.0
      %367 = vmatprep.subr.mxu0 0.0
      %368 = vmatpush1.msra.mxu0 0.0
      %369 = vmatprep.subr.mxu0 0.0
      %370 = vmatpush1.msra.mxu0 0.0
      %371 = vmatprep.subr.mxu0 0.0
      %372 = vmatpush1.msra.mxu0 0.0
      %373 = vmatprep.subr.mxu0 0.0
      %374 = vmatpush1.msra.mxu0 0.0
      %375 = vmatprep.subr.mxu0 0.0
      %376 = vmatpush1.msra.mxu0 0.0
      %377 = vmatprep.subr.mxu0 0.0
      %378 = vmatpush1.msra.mxu0 0.0
      %379 = vmatprep.subr.mxu0 0.0
      %380 = vmatpush1.msra.mxu0 0.0
      %381 = vmatprep.subr.mxu0 0.0
      %382 = vmatpush1.msra.mxu0 0.0
      %383 = vmatprep.subr.mxu0 0.0
      %384 = vmatpush1.msra.mxu0 0.0
      %385 = vmatprep.subr.mxu0 0.0
      %386 = vmatpush1.msra.mxu0 0.0
      %387 = vmatprep.subr.mxu0 0.0
      %388 = vmatpush1.msra.mxu0 0.0
      %389 = vmatprep.subr.mxu0 0.0
      %390 = vmatpush1.msra.mxu0 0.0
      %391 = vmatprep.subr.mxu0 0.0
      %392 = vmatpush1.msra.mxu0 0.0
      %393 = vmatprep.subr.mxu0 0.0
      %394 = vmatpush1.msra.mxu0 0.0
      %395 = vmatprep.subr.mxu0 0.0
      %396 = vmatpush1.msra.mxu0 0.0
      %397 = vmatprep.subr.mxu0 0.0
      %398 = vmatpush1.msra.mxu0 0.0
      %399 = vmatprep.mubr.f32.mxu0 0.0
      %400 = vmatmul.mubr.f32.gmra.mrb[0].mxu0 %v333
      %v401 = vpop.f32.mrb[0].mxu0
      %v402 = vadd.f32 %v329, %v401
      %v403 = vpop.f32.mrb[0].mxu0
      %404 = vdwg.mxu0
      %v405 = vld [vmem:[%s309] sm:$0xff]
      %v406 = vadd.f32 %v402, %v405
      %407 = vst [vmem:[%s321] sm:$0xff] %v406
      %p408 = scmp.lt.s32.totalorder %s20, 1
      %s409 = scalar_select %p408, %s20, 1
      %p410 = scmp.lt.s32.totalorder %s22, 1
      %s411 = scalar_select %p410, %s22, 1
      %p412 = scmp.lt.s32.totalorder %s21, 1
      %s413 = scalar_select %p412, %s21, 1
      %s414 = smul.addr %s411, 2
      %s415 = sadd.s32 %s413, %s414
      %s416 = smul.addr %s409, 4
      %s417 = sadd.s32 %s415, %s416
      %s418 = smul.addr %s417, 8
      %s419 = scalar_lea.vmem %s4, %s418
      // Predicated region
      $region37: #{outer_product_mean.1} parent=35 // pred_check
        %p420 = pneg %p163
      $region38: #{outer_product_mean.1} parent=35 // pred_check_branch
        %422 = sbr.rel (%p420) target = $region40
      $region39: #{outer_product_mean.1} parent=35 // pred_region
        _
      $region40: #{outer_product_mean.1} parent=35 // pred_fallthru
        _
    $region36: #{outer_product_mean.1} parent=5 // pred_fallthru
      _
    %p423 = scmp.le.s32.totalorder 2, %s10
    // Predicated region
    $region41: #{outer_product_mean.1} parent=5 // pred_check
      %p424 = pneg %p423
    $region42: #{outer_product_mean.1} parent=5 // pred_check_branch
      %426 = sbr.rel (%p424) target = $region44
    $region43: #{outer_product_mean.1} parent=5 // pred_region
      %s427 = ssub.s32 %s10, 2
      // Predicated region
      $region45: #{outer_product_mean.1} parent=43 // pred_check
        %p428 = pneg %p169
      $region46: #{outer_product_mean.1} parent=43 // pred_check_branch
        %430 = sbr.rel (%p428) target = $region48
      $region47: #{outer_product_mean.1} parent=43 // pred_region
        %p431 = scmp.lt.s32.totalorder %s23, 1
        %s432 = scalar_select %p431, %s23, 1
        %p433 = scmp.lt.s32.totalorder %s25, 1
        %s434 = scalar_select %p433, %s25, 1
        %p435 = scmp.lt.s32.totalorder %s24, 1
        %s436 = scalar_select %p435, %s24, 1
        %s437 = smul.addr %s434, 2
        %s438 = sadd.s32 %s436, %s437
        %s439 = smul.addr %s432, 4
        %s440 = sadd.s32 %s438, %s439
        %s441 = smul.addr %s440, 8
        %s442 = scalar_lea.vmem %s4, %s441
      $region48: #{outer_product_mean.1} parent=43 // pred_fallthru
        _
    $region44: #{outer_product_mean.1} parent=5 // pred_fallthru
      _
  $region6: #{outer_product_mean.1} parent=0 // loop_footer
    %s14 = sadd.s32 1, %s10
  $region7: #{outer_product_mean.1} parent=0 // loop_footer_branch
    %9 = sbr.rel target = $region3
  $region8: #{outer_product_mean.1} parent=0 // loop_exit
    _

</llo_original>
